<compile_context>
chip_gen: v7x
topology: tpu7x:2x2x1
jax: 0.10.0
libtpu: 0.0.40
codegen_flags: <defaults>
</compile_context>

<pallas_src>
import functools

import jax
import jax.numpy as jnp
from jax.experimental import pallas as pl
from jax.experimental.pallas import tpu as pltpu

IN_SIZE = 16
HID_SIZE = 32
OUT_SIZE = 32
N_LAYER = 4
DROP_PROB = 0.5


def siamese_kernel(x_ref, mask_ref,
                   w0_ref, b0_ref, w1_ref, b1_ref,
                   w2_ref, b2_ref, w3_ref, b3_ref,
                   wo_ref, bo_ref,
                   out_ref, *, batch, apply_dropout):
    ws = (w0_ref, w1_ref, w2_ref, w3_ref)
    bs = (b0_ref, b1_ref, b2_ref, b3_ref)

    # Fused towers: rows [0, B) are tower-1, rows [B, 2B) are tower-2.
    h = x_ref[...]                                          # (2B, IN_SIZE), f32
    for i in range(N_LAYER):
        h = jnp.dot(h, ws[i][...], preferred_element_type=jnp.float32)
        h = h + bs[i][...]                                  # (1, n_out) bias, broadcast once
        if i < N_LAYER - 1:
            h = jnp.maximum(h, 0.0)                         # ReLU
            if apply_dropout:
                # mask_ref[i] is a precomputed Bernoulli(1-p) keep-mask already
                # scaled by 1/(1-p): dropout == a single VPU multiply.
                h = h * mask_ref[i]

    out1 = h[:batch, :]
    out2 = h[batch:, :]
    dist = jnp.abs(out1 - out2)                             # (B, OUT_SIZE)

    # Weighted-L1 head: Linear(OUT_SIZE, 1) done as a lane reduction on the VPU/XLU
    # instead of a 1-wide MXU matmul.  wo_ref is the (1, OUT_SIZE) weight row.
    out = jnp.sum(dist * wo_ref[...], axis=-1, keepdims=True) + bo_ref[...]
    out_ref[...] = out                                      # (B, 1)


def init_params(key):
    """Synthetic parameters matching the nn.Linear shapes.

    PyTorch stores Linear weights as (out_features, in_features); the hidden-layer
    weights are kept pre-transposed as (in_features, out_features) so every layer is a
    plain `x @ W + b`.  The final Linear(out_size, 1) weight is kept as a (1, out_size)
    row because the kernel applies it as a lane reduction.
    """
    dims = []
    for i in range(N_LAYER):
        n_in = n_out = HID_SIZE
        if i == 0:
            n_in = IN_SIZE
        elif i == N_LAYER - 1:
            n_out = OUT_SIZE
        dims.append((n_in, n_out))

    params = []
    for (n_in, n_out) in dims:
        key, kw, kb = jax.random.split(key, 3)
        bound = 1.0 / (n_in ** 0.5)
        w = jax.random.uniform(kw, (n_in, n_out), jnp.float32, -bound, bound)
        b = jax.random.uniform(kb, (1, n_out), jnp.float32, -bound, bound)
        params += [w, b]

    # self.out = nn.Linear(out_size, 1)
    key, kw, kb = jax.random.split(key, 3)
    bound = 1.0 / (OUT_SIZE ** 0.5)
    wo = jax.random.uniform(kw, (1, OUT_SIZE), jnp.float32, -bound, bound)
    bo = jax.random.uniform(kb, (1, 1), jnp.float32, -bound, bound)
    params += [wo, bo]
    return params


@functools.partial(jax.jit, static_argnames=("drop_prob",))
def siamese_forward(x1, x2, params, dropout_key, drop_prob=DROP_PROB):
    # TODO(synk): group_size > 1 path (per-group mean of embeddings) not implemented;
    #             this mirrors the module's default group_size=1 branch.
    # TODO(synk): if B grows to O(100s+), tile the batch with a grid
    #             (TILE_B multiple of 8, weights on a constant index_map,
    #             dimension_semantics=("parallel",)) for HBM pipelining / megacore.
    B = x1.shape[0]

    # Tower fusion: single (2B, IN) activation -> one matmul chain in the kernel.
    x = jnp.concatenate([x1, x2], axis=0).astype(jnp.float32)

    apply_dropout = drop_prob > 0.0
    if apply_dropout:
        # F.dropout default training=True -> dropout always applied, p = drop_prob.
        keep = jax.random.bernoulli(dropout_key, 1.0 - drop_prob,
                                    (N_LAYER - 1, 2 * B, HID_SIZE))
        masks = keep.astype(jnp.float32) * (1.0 / (1.0 - drop_prob))
    else:
        masks = jnp.ones((N_LAYER - 1, 2 * B, HID_SIZE), jnp.float32)

    vmem = pl.BlockSpec(memory_space=pltpu.MemorySpace.VMEM)
    kernel = functools.partial(siamese_kernel, batch=B, apply_dropout=apply_dropout)
    out = pl.pallas_call(
        kernel,
        out_shape=jax.ShapeDtypeStruct((B, 1), jnp.float32),
        in_specs=[vmem] * (2 + len(params)),
        out_specs=vmem,
    )(x, masks, *params)

    # group_size == 1  ->  out.squeeze()
    return jnp.squeeze(out)


if __name__ == "__main__":
    key = jax.random.PRNGKey(0)
    k_params, k_x1, k_x2, k_drop = jax.random.split(key, 4)

    B = 8
    x1 = jax.random.normal(k_x1, (B, IN_SIZE), jnp.float32)
    x2 = jax.random.normal(k_x2, (B, IN_SIZE), jnp.float32)
    params = init_params(k_params)

    out = siamese_forward(x1, x2, params, k_drop)
    jax.block_until_ready(out)
    assert out.shape == (B,), out.shape
    print("KERNEL_OK")
</pallas_src>

<mosaic_0001>
module attributes {stable_mosaic.version = 11 : i64} {
  func.func @siamese_kernel(%arg0: memref<16x16xf32, #tpu.memory_space<vmem>>, %arg1: memref<3x16x32xf32, #tpu.memory_space<vmem>>, %arg2: memref<16x32xf32, #tpu.memory_space<vmem>>, %arg3: memref<1x32xf32, #tpu.memory_space<vmem>>, %arg4: memref<32x32xf32, #tpu.memory_space<vmem>>, %arg5: memref<1x32xf32, #tpu.memory_space<vmem>>, %arg6: memref<32x32xf32, #tpu.memory_space<vmem>>, %arg7: memref<1x32xf32, #tpu.memory_space<vmem>>, %arg8: memref<32x32xf32, #tpu.memory_space<vmem>>, %arg9: memref<1x32xf32, #tpu.memory_space<vmem>>, %arg10: memref<1x32xf32, #tpu.memory_space<vmem>>, %arg11: memref<1x1xf32, #tpu.memory_space<vmem>>, %arg12: memref<8x1xf32, #tpu.memory_space<vmem>>) attributes {dimension_semantics = [], scalar_prefetch = 0 : i64, scratch_operands = 0 : i64, tpu.core_type = #tpu.core_type<tc>} {
    %c0 = arith.constant 0 : index
    %c0_0 = arith.constant 0 : index
    %0 = vector.load %arg0[%c0, %c0_0] : memref<16x16xf32, #tpu.memory_space<vmem>>, vector<16x16xf32>
    %c0_1 = arith.constant 0 : index
    %c0_2 = arith.constant 0 : index
    %1 = vector.load %arg2[%c0_1, %c0_2] : memref<16x32xf32, #tpu.memory_space<vmem>>, vector<16x32xf32>
    %cst = arith.constant dense<0.000000e+00> : vector<16x32xf32>
    %2 = tpu.matmul %0, %1, %cst {dimension_numbers = #tpu.dot_dimension_numbers<[1], [0], [0], [1], [0, 0, 1, 1], [], []>} : vector<16x16xf32>, vector<16x32xf32>, vector<16x32xf32> -> vector<16x32xf32>
    %c0_3 = arith.constant 0 : index
    %c0_4 = arith.constant 0 : index
    %3 = vector.load %arg3[%c0_3, %c0_4] : memref<1x32xf32, #tpu.memory_space<vmem>>, vector<1x32xf32>
    %4 = vector.broadcast %3 : vector<1x32xf32> to vector<16x32xf32>
    %5 = arith.addf %2, %4 : vector<16x32xf32>
    %cst_5 = arith.constant 0.000000e+00 : f32
    %6 = vector.broadcast %cst_5 : f32 to vector<16x32xf32>
    %7 = arith.maximumf %5, %6 : vector<16x32xf32>
    %c0_6 = arith.constant 0 : index
    %c0_7 = arith.constant 0 : index
    %c0_8 = arith.constant 0 : index
    %8 = vector.load %arg1[%c0_6, %c0_7, %c0_8] : memref<3x16x32xf32, #tpu.memory_space<vmem>>, vector<1x16x32xf32>
    %9 = vector.shape_cast %8 : vector<1x16x32xf32> to vector<16x32xf32>
    %10 = arith.mulf %7, %9 : vector<16x32xf32>
    %c0_9 = arith.constant 0 : index
    %c0_10 = arith.constant 0 : index
    %11 = vector.load %arg4[%c0_9, %c0_10] : memref<32x32xf32, #tpu.memory_space<vmem>>, vector<32x32xf32>
    %cst_11 = arith.constant dense<0.000000e+00> : vector<16x32xf32>
    %12 = tpu.matmul %10, %11, %cst_11 {dimension_numbers = #tpu.dot_dimension_numbers<[1], [0], [0], [1], [0, 0, 1, 1], [], []>} : vector<16x32xf32>, vector<32x32xf32>, vector<16x32xf32> -> vector<16x32xf32>
    %c0_12 = arith.constant 0 : index
    %c0_13 = arith.constant 0 : index
    %13 = vector.load %arg5[%c0_12, %c0_13] : memref<1x32xf32, #tpu.memory_space<vmem>>, vector<1x32xf32>
    %14 = vector.broadcast %13 : vector<1x32xf32> to vector<16x32xf32>
    %15 = arith.addf %12, %14 : vector<16x32xf32>
    %cst_14 = arith.constant 0.000000e+00 : f32
    %16 = vector.broadcast %cst_14 : f32 to vector<16x32xf32>
    %17 = arith.maximumf %15, %16 : vector<16x32xf32>
    %c1 = arith.constant 1 : index
    %c0_15 = arith.constant 0 : index
    %c0_16 = arith.constant 0 : index
    %18 = vector.load %arg1[%c1, %c0_15, %c0_16] : memref<3x16x32xf32, #tpu.memory_space<vmem>>, vector<1x16x32xf32>
    %19 = vector.shape_cast %18 : vector<1x16x32xf32> to vector<16x32xf32>
    %20 = arith.mulf %17, %19 : vector<16x32xf32>
    %c0_17 = arith.constant 0 : index
    %c0_18 = arith.constant 0 : index
    %21 = vector.load %arg6[%c0_17, %c0_18] : memref<32x32xf32, #tpu.memory_space<vmem>>, vector<32x32xf32>
    %cst_19 = arith.constant dense<0.000000e+00> : vector<16x32xf32>
    %22 = tpu.matmul %20, %21, %cst_19 {dimension_numbers = #tpu.dot_dimension_numbers<[1], [0], [0], [1], [0, 0, 1, 1], [], []>} : vector<16x32xf32>, vector<32x32xf32>, vector<16x32xf32> -> vector<16x32xf32>
    %c0_20 = arith.constant 0 : index
    %c0_21 = arith.constant 0 : index
    %23 = vector.load %arg7[%c0_20, %c0_21] : memref<1x32xf32, #tpu.memory_space<vmem>>, vector<1x32xf32>
    %24 = vector.broadcast %23 : vector<1x32xf32> to vector<16x32xf32>
    %25 = arith.addf %22, %24 : vector<16x32xf32>
    %cst_22 = arith.constant 0.000000e+00 : f32
    %26 = vector.broadcast %cst_22 : f32 to vector<16x32xf32>
    %27 = arith.maximumf %25, %26 : vector<16x32xf32>
    %c2 = arith.constant 2 : index
    %c0_23 = arith.constant 0 : index
    %c0_24 = arith.constant 0 : index
    %28 = vector.load %arg1[%c2, %c0_23, %c0_24] : memref<3x16x32xf32, #tpu.memory_space<vmem>>, vector<1x16x32xf32>
    %29 = vector.shape_cast %28 : vector<1x16x32xf32> to vector<16x32xf32>
    %30 = arith.mulf %27, %29 : vector<16x32xf32>
    %c0_25 = arith.constant 0 : index
    %c0_26 = arith.constant 0 : index
    %31 = vector.load %arg8[%c0_25, %c0_26] : memref<32x32xf32, #tpu.memory_space<vmem>>, vector<32x32xf32>
    %cst_27 = arith.constant dense<0.000000e+00> : vector<16x32xf32>
    %32 = tpu.matmul %30, %31, %cst_27 {dimension_numbers = #tpu.dot_dimension_numbers<[1], [0], [0], [1], [0, 0, 1, 1], [], []>} : vector<16x32xf32>, vector<32x32xf32>, vector<16x32xf32> -> vector<16x32xf32>
    %c0_28 = arith.constant 0 : index
    %c0_29 = arith.constant 0 : index
    %33 = vector.load %arg9[%c0_28, %c0_29] : memref<1x32xf32, #tpu.memory_space<vmem>>, vector<1x32xf32>
    %34 = vector.broadcast %33 : vector<1x32xf32> to vector<16x32xf32>
    %35 = arith.addf %32, %34 : vector<16x32xf32>
    %36 = vector.extract_strided_slice %35 {offsets = [0, 0], sizes = [8, 32], strides = [1, 1]} : vector<16x32xf32> to vector<8x32xf32>
    %37 = vector.extract_strided_slice %35 {offsets = [8, 0], sizes = [8, 32], strides = [1, 1]} : vector<16x32xf32> to vector<8x32xf32>
    %38 = arith.subf %36, %37 : vector<8x32xf32>
    %39 = math.absf %38 : vector<8x32xf32>
    %c0_30 = arith.constant 0 : index
    %c0_31 = arith.constant 0 : index
    %40 = vector.load %arg10[%c0_30, %c0_31] : memref<1x32xf32, #tpu.memory_space<vmem>>, vector<1x32xf32>
    %41 = vector.broadcast %40 : vector<1x32xf32> to vector<8x32xf32>
    %42 = arith.mulf %39, %41 : vector<8x32xf32>
    %cst_32 = arith.constant dense<0.000000e+00> : vector<8xf32>
    %43 = vector.multi_reduction <add>, %42, %cst_32 [1] : vector<8x32xf32> to vector<8xf32>
    %44 = vector.shape_cast %43 : vector<8xf32> to vector<8x1xf32>
    %c0_33 = arith.constant 0 : index
    %c0_34 = arith.constant 0 : index
    %45 = vector.load %arg11[%c0_33, %c0_34] : memref<1x1xf32, #tpu.memory_space<vmem>>, vector<1x1xf32>
    %46 = vector.broadcast %45 : vector<1x1xf32> to vector<8x1xf32>
    %47 = arith.addf %44, %46 : vector<8x1xf32>
    %c0_35 = arith.constant 0 : index
    %c0_36 = arith.constant 0 : index
    %48 = vector.load %arg12[%c0_35, %c0_36] : memref<8x1xf32, #tpu.memory_space<vmem>>, vector<8x1xf32>
    tpu.vector_store %arg12[%c0_35, %c0_36], %47 {strides = array<i32>} : memref<8x1xf32, #tpu.memory_space<vmem>>, vector<8x1xf32>,
    return
  }
}

</mosaic_0001>

<llo_original>
// kernel: siamese_forward.1
$region0: #{siamese_forward.1}
  #allocation0 [shape = 'u32[]', space=smem, size = 0x4, offset = 0x4, fixed_abs, tag = 'smem constant byte address 0x4 - core index']
  #allocation1 [shape = 'u32[144,128]{1,0:T(1,128)}', space=vmem, size = 0x12000, scoped, tag = 'internal scratch']
  #allocation2 [shape = 'f32[1,1]{1,0:T(1,128)S(1)}', space=vmem, size = 0x200, scoped, tag = 'scoped memory for siamese_forward.1']
  %s0 = inlined_call_operand.vmem [shape: f32[16,16], index: 0, kind: input, shape index: {}]
  %s1 = inlined_call_operand.vmem [shape: f32[3,16,32], index: 1, kind: input, shape index: {}]
  %s2 = inlined_call_operand.vmem [shape: f32[16,32], index: 2, kind: input, shape index: {}]
  %s3 = inlined_call_operand.vmem [shape: f32[1,32], index: 3, kind: input, shape index: {}]
  %s4 = inlined_call_operand.vmem [shape: f32[32,32], index: 4, kind: input, shape index: {}]
  %s5 = inlined_call_operand.vmem [shape: f32[1,32], index: 5, kind: input, shape index: {}]
  %s6 = inlined_call_operand.vmem [shape: f32[32,32], index: 6, kind: input, shape index: {}]
  %s7 = inlined_call_operand.vmem [shape: f32[1,32], index: 7, kind: input, shape index: {}]
  %s8 = inlined_call_operand.vmem [shape: f32[32,32], index: 8, kind: input, shape index: {}]
  %s9 = inlined_call_operand.vmem [shape: f32[1,32], index: 9, kind: input, shape index: {}]
  %s10 = inlined_call_operand.vmem [shape: f32[1,32], index: 10, kind: input, shape index: {}]
  %s11 = inlined_call_operand.<no memory space> [shape: f32[1,1], index: 11, kind: input, shape index: {}]
  %s12 = inlined_call_operand.vmem [shape: f32[8,1], index: 12, kind: output, shape index: {}]
  %s13 = sld [smem:[#allocation0]]
  $region58: #{siamese_forward.1} parent=0
    _
  %s15 = ssub.s32 1, %s13
  %s16 = scalar_select 0, %s15, %s13
  %v17 = vstv %s11
  %18 = vst [vmem:[#allocation2] sm:$0x1] %v17
  // Predicated region
  $region2: #{siamese_forward.1} parent=0 // pred_check
    _
  $region3: #{siamese_forward.1} parent=0 // pred_check_branch
    %20 = sbr.rel (0) target = $region5
  $region4: #{siamese_forward.1} parent=0 // pred_region
    _
  $region5: #{siamese_forward.1} parent=0 // pred_fallthru
    _
  // Predicated region
  $region6: #{siamese_forward.1} parent=0 // pred_check
    _
  $region7: #{siamese_forward.1} parent=0 // pred_check_branch
    %22 = sbr.rel (0) target = $region9
  $region8: #{siamese_forward.1} parent=0 // pred_region
    _
  $region9: #{siamese_forward.1} parent=0 // pred_fallthru
    _
  // Predicated region
  $region10: #{siamese_forward.1} parent=0 // pred_check
    _
  $region11: #{siamese_forward.1} parent=0 // pred_check_branch
    %24 = sbr.rel (0) target = $region13
  $region12: #{siamese_forward.1} parent=0 // pred_region
    _
  $region13: #{siamese_forward.1} parent=0 // pred_fallthru
    _
  // Predicated region
  $region14: #{siamese_forward.1} parent=0 // pred_check
    _
  $region15: #{siamese_forward.1} parent=0 // pred_check_branch
    %26 = sbr.rel (0) target = $region17
  $region16: #{siamese_forward.1} parent=0 // pred_region
    _
  $region17: #{siamese_forward.1} parent=0 // pred_fallthru
    _
  // Predicated region
  $region18: #{siamese_forward.1} parent=0 // pred_check
    _
  $region19: #{siamese_forward.1} parent=0 // pred_check_branch
    %28 = sbr.rel (0) target = $region21
  $region20: #{siamese_forward.1} parent=0 // pred_region
    _
  $region21: #{siamese_forward.1} parent=0 // pred_fallthru
    _
  // Predicated region
  $region22: #{siamese_forward.1} parent=0 // pred_check
    _
  $region23: #{siamese_forward.1} parent=0 // pred_check_branch
    %30 = sbr.rel (0) target = $region25
  $region24: #{siamese_forward.1} parent=0 // pred_region
    _
  $region25: #{siamese_forward.1} parent=0 // pred_fallthru
    _
  // Predicated region
  $region26: #{siamese_forward.1} parent=0 // pred_check
    _
  $region27: #{siamese_forward.1} parent=0 // pred_check_branch
    %32 = sbr.rel (0) target = $region29
  $region28: #{siamese_forward.1} parent=0 // pred_region
    _
  $region29: #{siamese_forward.1} parent=0 // pred_fallthru
    _
  // Predicated region
  $region30: #{siamese_forward.1} parent=0 // pred_check
    _
  $region31: #{siamese_forward.1} parent=0 // pred_check_branch
    %34 = sbr.rel (0) target = $region33
  $region32: #{siamese_forward.1} parent=0 // pred_region
    _
  $region33: #{siamese_forward.1} parent=0 // pred_fallthru
    _
  // Predicated region
  $region34: #{siamese_forward.1} parent=0 // pred_check
    _
  $region35: #{siamese_forward.1} parent=0 // pred_check_branch
    %36 = sbr.rel (0) target = $region37
  $region36: #{siamese_forward.1} parent=0 // pred_region
    _
  $region37: #{siamese_forward.1} parent=0 // pred_fallthru
    _
  // Predicated region
  $region38: #{siamese_forward.1} parent=0 // pred_check
    _
  $region39: #{siamese_forward.1} parent=0 // pred_check_branch
    %38 = sbr.rel (0) target = $region41
  $region40: #{siamese_forward.1} parent=0 // pred_region
    _
  $region41: #{siamese_forward.1} parent=0 // pred_fallthru
    _
  // Predicated region
  $region42: #{siamese_forward.1} parent=0 // pred_check
    _
  $region43: #{siamese_forward.1} parent=0 // pred_check_branch
    %40 = sbr.rel (0) target = $region45
  $region44: #{siamese_forward.1} parent=0 // pred_region
    _
  $region45: #{siamese_forward.1} parent=0 // pred_fallthru
    _
  // Predicated region
  $region46: #{siamese_forward.1} parent=0 // pred_check
    _
  $region47: #{siamese_forward.1} parent=0 // pred_check_branch
    %42 = sbr.rel (0) target = $region49
  $region48: #{siamese_forward.1} parent=0 // pred_region
    _
  $region49: #{siamese_forward.1} parent=0 // pred_fallthru
    _
  %v43 = vld [vmem:[%s0] sm:$0xff]
  %v44 = vld [vmem:[%s0 + $0x8] sm:$0xff]
  %v45 = vld [vmem:[%s2] sm:$0xff]
  %v46 = vld [vmem:[%s2 + $0x8] sm:$0xff]
  %v47 = vld [vmem:[%s3] sm:$0x1]
  %v49 = vlaneseq
  %v50 = vshrl.u32 %v49, 7
  %v51 = vsub.s32 0, %v50
  %v52 = vrot.slane %v47, %v51
  %vm54 = vcmask 130048
  %v56 = vsel %vm54, %v43, 0
  %v59 = vsel %vm54, %v44, 0
  %61 = vmatprep.subr.mxu0 0.0
  %62 = vmatpush1.msra.mxu0 %v45
  %63 = vmatprep.subr.mxu0 0.0
  %64 = vmatpush1.msra.mxu0 %v46
  %65 = vmatprep.subr.mxu0 0.0
  %66 = vmatpush1.msra.mxu0 0.0
  %67 = vmatprep.subr.mxu0 0.0
  %68 = vmatpush1.msra.mxu0 0.0
  %69 = vmatprep.subr.mxu0 0.0
  %70 = vmatpush1.msra.mxu0 0.0
  %71 = vmatprep.subr.mxu0 0.0
  %72 = vmatpush1.msra.mxu0 0.0
  %73 = vmatprep.subr.mxu0 0.0
  %74 = vmatpush1.msra.mxu0 0.0
  %75 = vmatprep.subr.mxu0 0.0
  %76 = vmatpush1.msra.mxu0 0.0
  %77 = vmatprep.subr.mxu0 0.0
  %78 = vmatpush1.msra.mxu0 0.0
  %79 = vmatprep.subr.mxu0 0.0
  %80 = vmatpush1.msra.mxu0 0.0
  %81 = vmatprep.subr.mxu0 0.0
  %82 = vmatpush1.msra.mxu0 0.0
  %83 = vmatprep.subr.mxu0 0.0
  %84 = vmatpush1.msra.mxu0 0.0
  %85 = vmatprep.subr.mxu0 0.0
  %86 = vmatpush1.msra.mxu0 0.0
  %87 = vmatprep.subr.mxu0 0.0
  %88 = vmatpush1.msra.mxu0 0.0
  %89 = vmatprep.subr.mxu0 0.0
  %90 = vmatpush1.msra.mxu0 0.0
  %91 = vmatprep.subr.mxu0 0.0
  %92 = vmatpush1.msra.mxu0 0.0
  %93 = vmatprep.subr.mxu0 0.0
  %94 = vmatpush1.msra.mxu0 0.0
  %95 = vmatprep.subr.mxu0 0.0
  %96 = vmatpush1.msra.mxu0 0.0
  %97 = vmatprep.subr.mxu0 0.0
  %98 = vmatpush1.msra.mxu0 0.0
  %99 = vmatprep.subr.mxu0 0.0
  %100 = vmatpush1.msra.mxu0 0.0
  %101 = vmatprep.subr.mxu0 0.0
  %102 = vmatpush1.msra.mxu0 0.0
  %103 = vmatprep.subr.mxu0 0.0
  %104 = vmatpush1.msra.mxu0 0.0
  %105 = vmatprep.subr.mxu0 0.0
  %106 = vmatpush1.msra.mxu0 0.0
  %107 = vmatprep.subr.mxu0 0.0
  %108 = vmatpush1.msra.mxu0 0.0
  %109 = vmatprep.subr.mxu0 0.0
  %110 = vmatpush1.msra.mxu0 0.0
  %111 = vmatprep.subr.mxu0 0.0
  %112 = vmatpush1.msra.mxu0 0.0
  %113 = vmatprep.subr.mxu0 0.0
  %114 = vmatpush1.msra.mxu0 0.0
  %115 = vmatprep.subr.mxu0 0.0
  %116 = vmatpush1.msra.mxu0 0.0
  %117 = vmatprep.subr.mxu0 0.0
  %118 = vmatpush1.msra.mxu0 0.0
  %119 = vmatprep.subr.mxu0 0.0
  %120 = vmatpush1.msra.mxu0 0.0
  %121 = vmatprep.subr.mxu0 0.0
  %122 = vmatpush1.msra.mxu0 0.0
  %123 = vmatprep.subr.mxu0 0.0
  %124 = vmatpush1.msra.mxu0 0.0
  %125 = vmatprep.mubr.f32.mxu0 0.0
  %126 = vmatmul.mubr.f32.gmra.mrb[0].mxu0 %v56
  %v127 = vpop.f32.mrb[0].mxu0
  %v128 = vadd.f32 %v52, %v127
  %v129 = vpop.f32.mrb[0].mxu0
  %130 = vmatprep.mubr.f32.mxu0 0.0
  %131 = vmatmul.mubr.f32.gmra.mrb[0].mxu0 %v59
  %v132 = vpop.f32.mrb[0].mxu0
  %v133 = vadd.f32 %v52, %v132
  %v134 = vpop.f32.mrb[0].mxu0
  %135 = vdwg.mxu0
  %v136 = vmax.f32 %v128, 0.0
  %v137 = vmax.f32 %v133, 0.0
  %v138 = vld [vmem:[%s1] sm:$0xff]
  %v139 = vld [vmem:[%s1 + $0x8] sm:$0xff]
  %v140 = vmul.f32 %v136, %v138
  %v141 = vmul.f32 %v137, %v139
  %v142 = vld [vmem:[%s4] sm:$0xff]
  %v143 = vld [vmem:[%s4 + $0x8] sm:$0xff]
  %v144 = vld [vmem:[%s4 + $0x10] sm:$0xff]
  %v145 = vld [vmem:[%s4 + $0x18] sm:$0xff]
  %v146 = vld [vmem:[%s5] sm:$0x1]
  %v148 = vlaneseq
  %v149 = vshrl.u32 %v148, 7
  %v150 = vsub.s32 0, %v149
  %v151 = vrot.slane %v146, %v150
  %vm153 = vcmask 261120
  %v155 = vsel %vm153, %v140, 0
  %v158 = vsel %vm153, %v141, 0
  %160 = vmatprep.subr.mxu0 0.0
  %161 = vmatpush1.msra.mxu0 %v142
  %162 = vmatprep.subr.mxu0 0.0
  %163 = vmatpush1.msra.mxu0 %v143
  %164 = vmatprep.subr.mxu0 0.0
  %165 = vmatpush1.msra.mxu0 %v144
  %166 = vmatprep.subr.mxu0 0.0
  %167 = vmatpush1.msra.mxu0 %v145
  %168 = vmatprep.subr.mxu0 0.0
  %169 = vmatpush1.msra.mxu0 0.0
  %170 = vmatprep.subr.mxu0 0.0
  %171 = vmatpush1.msra.mxu0 0.0
  %172 = vmatprep.subr.mxu0 0.0
  %173 = vmatpush1.msra.mxu0 0.0
  %174 = vmatprep.subr.mxu0 0.0
  %175 = vmatpush1.msra.mxu0 0.0
  %176 = vmatprep.subr.mxu0 0.0
  %177 = vmatpush1.msra.mxu0 0.0
  %178 = vmatprep.subr.mxu0 0.0
  %179 = vmatpush1.msra.mxu0 0.0
  %180 = vmatprep.subr.mxu0 0.0
  %181 = vmatpush1.msra.mxu0 0.0
  %182 = vmatprep.subr.mxu0 0.0
  %183 = vmatpush1.msra.mxu0 0.0
  %184 = vmatprep.subr.mxu0 0.0
  %185 = vmatpush1.msra.mxu0 0.0
  %186 = vmatprep.subr.mxu0 0.0
  %187 = vmatpush1.msra.mxu0 0.0
  %188 = vmatprep.subr.mxu0 0.0
  %189 = vmatpush1.msra.mxu0 0.0
  %190 = vmatprep.subr.mxu0 0.0
  %191 = vmatpush1.msra.mxu0 0.0
  %192 = vmatprep.subr.mxu0 0.0
  %193 = vmatpush1.msra.mxu0 0.0
  %194 = vmatprep.subr.mxu0 0.0
  %195 = vmatpush1.msra.mxu0 0.0
  %196 = vmatprep.subr.mxu0 0.0
  %197 = vmatpush1.msra.mxu0 0.0
  %198 = vmatprep.subr.mxu0 0.0
  %199 = vmatpush1.msra.mxu0 0.0
  %200 = vmatprep.subr.mxu0 0.0
  %201 = vmatpush1.msra.mxu0 0.0
  %202 = vmatprep.subr.mxu0 0.0
  %203 = vmatpush1.msra.mxu0 0.0
  %204 = vmatprep.subr.mxu0 0.0
  %205 = vmatpush1.msra.mxu0 0.0
  %206 = vmatprep.subr.mxu0 0.0
  %207 = vmatpush1.msra.mxu0 0.0
  %208 = vmatprep.subr.mxu0 0.0
  %209 = vmatpush1.msra.mxu0 0.0
  %210 = vmatprep.subr.mxu0 0.0
  %211 = vmatpush1.msra.mxu0 0.0
  %212 = vmatprep.subr.mxu0 0.0
  %213 = vmatpush1.msra.mxu0 0.0
  %214 = vmatprep.subr.mxu0 0.0
  %215 = vmatpush1.msra.mxu0 0.0
  %216 = vmatprep.subr.mxu0 0.0
  %217 = vmatpush1.msra.mxu0 0.0
  %218 = vmatprep.subr.mxu0 0.0
  %219 = vmatpush1.msra.mxu0 0.0
  %220 = vmatprep.subr.mxu0 0.0
  %221 = vmatpush1.msra.mxu0 0.0
  %222 = vmatprep.subr.mxu0 0.0
  %223 = vmatpush1.msra.mxu0 0.0
  %224 = vmatprep.mubr.f32.mxu0 0.0
  %225 = vmatmul.mubr.f32.gmra.mrb[0].mxu0 %v155
  %v226 = vpop.f32.mrb[0].mxu0
  %v227 = vadd.f32 %v151, %v226
  %v228 = vpop.f32.mrb[0].mxu0
  %229 = vmatprep.mubr.f32.mxu0 0.0
  %230 = vmatmul.mubr.f32.gmra.mrb[0].mxu0 %v158
  %v231 = vpop.f32.mrb[0].mxu0
  %v232 = vadd.f32 %v151, %v231
  %v233 = vpop.f32.mrb[0].mxu0
  %234 = vdwg.mxu0
  %v235 = vmax.f32 %v227, 0.0
  %v236 = vmax.f32 %v232, 0.0
  %s237 = scalar_lea.vmem %s1, 16
  %v238 = vld [vmem:[%s237] sm:$0xff]
  %v239 = vld [vmem:[%s237 + $0x8] sm:$0xff]
  %v240 = vmul.f32 %v235, %v238
  %v241 = vmul.f32 %v236, %v239
  %v242 = vld [vmem:[%s6] sm:$0xff]
  %v243 = vld [vmem:[%s6 + $0x8] sm:$0xff]
  %v244 = vld [vmem:[%s6 + $0x10] sm:$0xff]
  %v245 = vld [vmem:[%s6 + $0x18] sm:$0xff]
  %v246 = vld [vmem:[%s7] sm:$0x1]
  %v248 = vlaneseq
  %v249 = vshrl.u32 %v248, 7
  %v250 = vsub.s32 0, %v249
  %v251 = vrot.slane %v246, %v250
  %v254 = vsel %vm153, %v240, 0
  %v257 = vsel %vm153, %v241, 0
  %259 = vmatprep.subr.mxu0 0.0
  %260 = vmatpush1.msra.mxu0 %v242
  %261 = vmatprep.subr.mxu0 0.0
  %262 = vmatpush1.msra.mxu0 %v243
  %263 = vmatprep.subr.mxu0 0.0
  %264 = vmatpush1.msra.mxu0 %v244
  %265 = vmatprep.subr.mxu0 0.0
  %266 = vmatpush1.msra.mxu0 %v245
  %267 = vmatprep.subr.mxu0 0.0
  %268 = vmatpush1.msra.mxu0 0.0
  %269 = vmatprep.subr.mxu0 0.0
  %270 = vmatpush1.msra.mxu0 0.0
  %271 = vmatprep.subr.mxu0 0.0
  %272 = vmatpush1.msra.mxu0 0.0
  %273 = vmatprep.subr.mxu0 0.0
  %274 = vmatpush1.msra.mxu0 0.0
  %275 = vmatprep.subr.mxu0 0.0
  %276 = vmatpush1.msra.mxu0 0.0
  %277 = vmatprep.subr.mxu0 0.0
  %278 = vmatpush1.msra.mxu0 0.0
  %279 = vmatprep.subr.mxu0 0.0
  %280 = vmatpush1.msra.mxu0 0.0
  %281 = vmatprep.subr.mxu0 0.0
  %282 = vmatpush1.msra.mxu0 0.0
  %283 = vmatprep.subr.mxu0 0.0
  %284 = vmatpush1.msra.mxu0 0.0
  %285 = vmatprep.subr.mxu0 0.0
  %286 = vmatpush1.msra.mxu0 0.0
  %287 = vmatprep.subr.mxu0 0.0
  %288 = vmatpush1.msra.mxu0 0.0
  %289 = vmatprep.subr.mxu0 0.0
  %290 = vmatpush1.msra.mxu0 0.0
  %291 = vmatprep.subr.mxu0 0.0
  %292 = vmatpush1.msra.mxu0 0.0
  %293 = vmatprep.subr.mxu0 0.0
  %294 = vmatpush1.msra.mxu0 0.0
  %295 = vmatprep.subr.mxu0 0.0
  %296 = vmatpush1.msra.mxu0 0.0
  %297 = vmatprep.subr.mxu0 0.0
  %298 = vmatpush1.msra.mxu0 0.0
  %299 = vmatprep.subr.mxu0 0.0
  %300 = vmatpush1.msra.mxu0 0.0
  %301 = vmatprep.subr.mxu0 0.0
  %302 = vmatpush1.msra.mxu0 0.0
  %303 = vmatprep.subr.mxu0 0.0
  %304 = vmatpush1.msra.mxu0 0.0
  %305 = vmatprep.subr.mxu0 0.0
  %306 = vmatpush1.msra.mxu0 0.0
  %307 = vmatprep.subr.mxu0 0.0
  %308 = vmatpush1.msra.mxu0 0.0
  %309 = vmatprep.subr.mxu0 0.0
  %310 = vmatpush1.msra.mxu0 0.0
  %311 = vmatprep.subr.mxu0 0.0
  %312 = vmatpush1.msra.mxu0 0.0
  %313 = vmatprep.subr.mxu0 0.0
  %314 = vmatpush1.msra.mxu0 0.0
  %315 = vmatprep.subr.mxu0 0.0
  %316 = vmatpush1.msra.mxu0 0.0
  %317 = vmatprep.subr.mxu0 0.0
  %318 = vmatpush1.msra.mxu0 0.0
  %319 = vmatprep.subr.mxu0 0.0
  %320 = vmatpush1.msra.mxu0 0.0
  %321 = vmatprep.subr.mxu0 0.0
  %322 = vmatpush1.msra.mxu0 0.0
  %323 = vmatprep.mubr.f32.mxu0 0.0
  %324 = vmatmul.mubr.f32.gmra.mrb[0].mxu0 %v254
  %v325 = vpop.f32.mrb[0].mxu0
  %v326 = vadd.f32 %v251, %v325
  %v327 = vpop.f32.mrb[0].mxu0
  %328 = vmatprep.mubr.f32.mxu0 0.0
  %329 = vmatmul.mubr.f32.gmra.mrb[0].mxu0 %v257
  %v330 = vpop.f32.mrb[0].mxu0
  %v331 = vadd.f32 %v251, %v330
  %v332 = vpop.f32.mrb[0].mxu0
  %333 = vdwg.mxu0
  %v334 = vmax.f32 %v326, 0.0
  %v335 = vmax.f32 %v331, 0.0
  %s336 = scalar_lea.vmem %s1, 32
  %v337 = vld [vmem:[%s336] sm:$0xff]
  %v338 = vld [vmem:[%s336 + $0x8] sm:$0xff]
  %v339 = vmul.f32 %v334, %v337
  %v340 = vmul.f32 %v335, %v338
  %v341 = vld [vmem:[%s8] sm:$0xff]
  %v342 = vld [vmem:[%s8 + $0x8] sm:$0xff]
  %v343 = vld [vmem:[%s8 + $0x10] sm:$0xff]
  %v344 = vld [vmem:[%s8 + $0x18] sm:$0xff]
  %v345 = vld [vmem:[%s9] sm:$0x1]
  %v347 = vlaneseq
  %v348 = vshrl.u32 %v347, 7
  %v349 = vsub.s32 0, %v348
  %v350 = vrot.slane %v345, %v349
  %v353 = vsel %vm153, %v339, 0
  %v356 = vsel %vm153, %v340, 0
  %358 = vmatprep.subr.mxu0 0.0
  %359 = vmatpush1.msra.mxu0 %v341
  %360 = vmatprep.subr.mxu0 0.0
  %361 = vmatpush1.msra.mxu0 %v342
  %362 = vmatprep.subr.mxu0 0.0
  %363 = vmatpush1.msra.mxu0 %v343
  %364 = vmatprep.subr.mxu0 0.0
  %365 = vmatpush1.msra.mxu0 %v344
  %366 = vmatprep.subr.mxu0 0.0
  %367 = vmatpush1.msra.mxu0 0.0
  %368 = vmatprep.subr.mxu0 0.0
  %369 = vmatpush1.msra.mxu0 0.0
  %370 = vmatprep.subr.mxu0 0.0
  %371 = vmatpush1.msra.mxu0 0.0
  %372 = vmatprep.subr.mxu0 0.0
  %373 = vmatpush1.msra.mxu0 0.0
  %374 = vmatprep.subr.mxu0 0.0
  %375 = vmatpush1.msra.mxu0 0.0
  %376 = vmatprep.subr.mxu0 0.0
  %377 = vmatpush1.msra.mxu0 0.0
  %378 = vmatprep.subr.mxu0 0.0
  %379 = vmatpush1.msra.mxu0 0.0
  %380 = vmatprep.subr.mxu0 0.0
  %381 = vmatpush1.msra.mxu0 0.0
  %382 = vmatprep.subr.mxu0 0.0
  %383 = vmatpush1.msra.mxu0 0.0
  %384 = vmatprep.subr.mxu0 0.0
  %385 = vmatpush1.msra.mxu0 0.0
  %386 = vmatprep.subr.mxu0 0.0
  %387 = vmatpush1.msra.mxu0 0.0
  %388 = vmatprep.subr.mxu0 0.0
  %389 = vmatpush1.msra.mxu0 0.0
  %390 = vmatprep.subr.mxu0 0.0
  %391 = vmatpush1.msra.mxu0 0.0
  %392 = vmatprep.subr.mxu0 0.0
  %393 = vmatpush1.msra.mxu0 0.0
  %394 = vmatprep.subr.mxu0 0.0
  %395 = vmatpush1.msra.mxu0 0.0
  %396 = vmatprep.subr.mxu0 0.0
  %397 = vmatpush1.msra.mxu0 0.0
  %398 = vmatprep.subr.mxu0 0.0
  %399 = vmatpush1.msra.mxu0 0.0
  %400 = vmatprep.subr.mxu0 0.0
  %401 = vmatpush1.msra.mxu0 0.0
  %402 = vmatprep.subr.mxu0 0.0
  %403 = vmatpush1.msra.mxu0 0.0
  %404 = vmatprep.subr.mxu0 0.0
  %405 = vmatpush1.msra.mxu0 0.0
  %406 = vmatprep.subr.mxu0 0.0
  %407 = vmatpush1.msra.mxu0 0.0
  %408 = vmatprep.subr.mxu0 0.0
  %409 = vmatpush1.msra.mxu0 0.0
  %410 = vmatprep.subr.mxu0 0.0
  %411 = vmatpush1.msra.mxu0 0.0
  %412 = vmatprep.subr.mxu0 0.0
  %413 = vmatpush1.msra.mxu0 0.0
  %414 = vmatprep.subr.mxu0 0.0
  %415 = vmatpush1.msra.mxu0 0.0
  %416 = vmatprep.subr.mxu0 0.0
  %417 = vmatpush1.msra.mxu0 0.0
  %418 = vmatprep.subr.mxu0 0.0
  %419 = vmatpush1.msra.mxu0 0.0
  %420 = vmatprep.subr.mxu0 0.0
  %421 = vmatpush1.msra.mxu0 0.0
  %422 = vmatprep.mubr.f32.mxu0 0.0
  %423 = vmatmul.mubr.f32.gmra.mrb[0].mxu0 %v353
  %v424 = vpop.f32.mrb[0].mxu0
  %v425 = vadd.f32 %v350, %v424
  %v426 = vpop.f32.mrb[0].mxu0
  %427 = vmatprep.mubr.f32.mxu0 0.0
  %428 = vmatmul.mubr.f32.gmra.mrb[0].mxu0 %v356
  %v429 = vpop.f32.mrb[0].mxu0
  %v430 = vadd.f32 %v350, %v429
  %v431 = vpop.f32.mrb[0].mxu0
  %432 = vdwg.mxu0
  %v433 = vsub.f32 %v425, %v430
  %v434 = vand.u32 2147483647, %v433
  %v435 = vld [vmem:[%s10] sm:$0x1]
  %v437 = vlaneseq
  %v438 = vshrl.u32 %v437, 7
  %v439 = vsub.s32 0, %v438
  %v440 = vrot.slane %v435, %v439
  %v442 = vmul.f32 %v434, %v440
  %v443 = vsel %vm153, %v442, 0.0
  %444 = vadd.xlane.f32.xlu0 %v443
  %v445 = vpop.xlane.xlu0 %444
  %v446 = vld [vmem:[#allocation2] sm:$0x1]
  %v448 = vlaneseq
  %v449 = vshrl.u32 %v448, 7
  %v450 = vsub.s32 0, %v449
  %v451 = vrot.slane %v446, %v450
  %v453 = vadd.f32 %v445, %v451
  %vm454 = vcmask 7168
  %455 = vst.msk [vmem:[%s12] sm:$0xff] %vm454, %v453
  // Predicated region
  $region50: #{siamese_forward.1} parent=0 // pred_check
    _
  $region51: #{siamese_forward.1} parent=0 // pred_check_branch
    %457 = sbr.rel (0) target = $region53
  $region52: #{siamese_forward.1} parent=0 // pred_region
    _
  $region53: #{siamese_forward.1} parent=0 // pred_fallthru
    _
  // Predicated region
  $region54: #{siamese_forward.1} parent=0 // pred_check
    _
  $region55: #{siamese_forward.1} parent=0 // pred_check_branch
    %459 = sbr.rel (0) target = $region57
  $region56: #{siamese_forward.1} parent=0 // pred_region
    _
  $region57: #{siamese_forward.1} parent=0 // pred_fallthru
    _

</llo_original>
